<compile_context>
chip_gen: v7x
topology: tpu7x:2x2x1
jax: 0.10.0
libtpu: 0.0.40
codegen_flags: <defaults>
</compile_context>

<pallas_src>
import functools
import math

import jax
import jax.numpy as jnp
from jax import lax
from jax.experimental import pallas as pl
from jax.experimental.pallas import tpu as pltpu

BN_EPS = 1e-5


def _fastconv_kernel(x_ref, mask_ref, wdw_ref, b1_ref, wpw_ref, b2_ref,
                     wcat_ref, b3_ref, out_ref, cat_ref, *, Bt, S, W):
    """One grid step = Bt batch elements fused as a (C, L=Bt*S) lane slab."""
    L = Bt * S
    mid = wpw_ref.shape[0]
    cdt = cat_ref.dtype                      # MXU operand dtype (bf16 or f32)

    # --- assemble the lane-fused slab -------------------------------------
    # Identity half goes straight into the top rows of the K=2*mid cat
    # operand; conv half is lane-concatenated into a (mid, L) f32 value.
    xc_parts = []
    for b in range(Bt):                      # static unroll over the batch tile
        xb = x_ref[b]                        # (C, S)
        cat_ref[:mid, b * S:(b + 1) * S] = xb[:mid, :].astype(cdt)
        xc_parts.append(xb[mid:, :].astype(jnp.float32))
    xc = xc_parts[0] if Bt == 1 else jnp.concatenate(xc_parts, axis=1)  # (mid, L)

    # --- depthwise 3x3, padding=1 (BN1 scale folded into wdw) -------------
    # Grid-invariant 0/1 masks (precomputed in the wrapper) implement the
    # zero padding AND zero out lane-roll wraparound across batch segments.
    m_l = mask_ref[0:1, :]                   # col >= 1
    m_r = mask_ref[1:2, :]                   # col <= W-2
    m_t = mask_ref[2:3, :]                   # row >= 1
    m_b = mask_ref[3:4, :]                   # row <= H-2

    xl = m_l * pltpu.roll(xc, 1, axis=1)       # value at (r, c-1), zero padded
    xr = m_r * pltpu.roll(xc, L - 1, axis=1)   # value at (r, c+1), zero padded

    def hrow(ky):                            # horizontal 1x3 MAC for kernel row ky
        return wdw_ref[ky, 0] * xl + wdw_ref[ky, 1] * xc + wdw_ref[ky, 2] * xr

    r0 = m_t * pltpu.roll(hrow(0), W, axis=1)        # contribution of row above
    r2 = m_b * pltpu.roll(hrow(2), L - W, axis=1)    # contribution of row below
    y = jnp.maximum(r0 + hrow(1) + r2 + b1_ref[...], 0.0)   # BN1 shift + ReLU

    # --- pointwise 1x1 conv (BN2 folded), MXU, f32 accumulation -----------
    y = jnp.dot(wpw_ref[...], y.astype(cdt), preferred_element_type=jnp.float32)
    y = jnp.maximum(y + b2_ref[...], 0.0)                    # BN2 shift + ReLU

    # --- final 1x1 conv: concat + channel_shuffle + both dots fused -------
    cat_ref[mid:, :] = y.astype(cdt)
    z = jnp.dot(wcat_ref[...], cat_ref[...], preferred_element_type=jnp.float32)
    z = jnp.maximum(z + b3_ref[...], 0.0)                    # BN3 shift + ReLU

    for b in range(Bt):
        out_ref[b] = z[:, b * S:(b + 1) * S].astype(out_ref.dtype)


def fast_conv_block(x_nchw, params, *, mxu_dtype=jnp.bfloat16, batch_tile=None):
    """params = (w_dw (mid,1,3,3), w_pw (mid,mid,1,1), w_fin (C,C,1,1),
                 bn1, bn2, bn3) with bn = (gamma, beta, running_mean, running_var)."""
    w_dw, w_pw, w_fin, bn1, bn2, bn3 = params
    B, C, H, W = x_nchw.shape
    mid = C // 2
    S = H * W

    if batch_tile is None:   # largest divisor of B that is <= 8 (whole batch if small)
        batch_tile = next(bt for bt in range(min(B, 8), 0, -1) if B % bt == 0)
    Bt = batch_tile
    assert B % Bt == 0, "batch_tile must divide B"
    nb = B // Bt
    L = Bt * S

    # Free reinterpretation of NCHW bytes as (B, C, H*W): no transposes.
    x_flat = x_nchw.reshape(B, C, S)

    def bn_fold(bn):
        gamma, beta, mean, var = bn
        scale = gamma / jnp.sqrt(var + BN_EPS)
        shift = beta - mean * scale
        return scale.astype(jnp.float32), shift.astype(jnp.float32)

    s1, b1 = bn_fold(bn1)
    s2, b2 = bn_fold(bn2)
    s3, b3 = bn_fold(bn3)

    # BN1 folded into the per-channel depthwise taps: (3, 3, mid, 1).
    wdw_k = (jnp.transpose(w_dw[:, 0, :, :], (1, 2, 0)) * s1) \
        .reshape(3, 3, mid, 1).astype(jnp.float32)
    b1_k = b1.reshape(mid, 1)

    # BN2 folded into the rows of the pointwise weight; MXU operand dtype.
    wpw_k = (s2[:, None] * w_pw[:, :, 0, 0]).astype(mxu_dtype)
    b2_k = b2.reshape(mid, 1)

    # channel_shuffle(groups=2): shuffled[2i]=identity[i], shuffled[2i+1]=conv[i]
    # => final conv = [wfin[:,0::2] | wfin[:,1::2]] @ [identity ; conv]  (K=2*mid)
    wfin = w_fin[:, :, 0, 0]
    wcat_k = jnp.concatenate([s3[:, None] * wfin[:, 0::2],
                              s3[:, None] * wfin[:, 1::2]],
                             axis=1).astype(mxu_dtype)        # (C, 2*mid)
    b3_k = b3.reshape(C, 1)

    # Grid-invariant boundary masks (0/1), tiled once per batch segment.
    p = jnp.arange(S, dtype=jnp.int32)
    c, r = p % W, p // W
    masks = jnp.stack([c >= 1, c <= W - 2, r >= 1, r <= H - 2]).astype(jnp.float32)
    masks = jnp.tile(masks, (1, Bt))                          # (4, L)

    def full(shape):
        n = len(shape)
        return pl.BlockSpec(shape, lambda i: (0,) * n)

    out_flat = pl.pallas_call(
        functools.partial(_fastconv_kernel, Bt=Bt, S=S, W=W),
        out_shape=jax.ShapeDtypeStruct((B, C, S), x_nchw.dtype),
        grid_spec=pltpu.PrefetchScalarGridSpec(
            num_scalar_prefetch=0,
            grid=(nb,),
            in_specs=[
                pl.BlockSpec((Bt, C, S), lambda i: (i, 0, 0)),
                full((4, L)),
                full((3, 3, mid, 1)),
                full((mid, 1)),
                full((mid, mid)),
                full((mid, 1)),
                full((C, 2 * mid)),
                full((C, 1)),
            ],
            out_specs=pl.BlockSpec((Bt, C, S), lambda i: (i, 0, 0)),
            scratch_shapes=[pltpu.VMEM((2 * mid, L), mxu_dtype)],
        ),
        compiler_params=pltpu.CompilerParams(
            dimension_semantics=("parallel",)),
    )(x_flat, masks, wdw_k, b1_k, wpw_k, b2_k, wcat_k, b3_k)

    return out_flat.reshape(B, C, H, W)       # free reshape back to NCHW


def reference(x, params):
    """Pure-JAX (lax.conv) reference matching the PyTorch forward (eval-mode BN)."""
    w_dw, w_pw, w_fin, bn1, bn2, bn3 = params
    B, C, H, W = x.shape
    mid = C // 2
    dn = ('NCHW', 'OIHW', 'NCHW')

    def bn(y, p):
        gamma, beta, mean, var = p
        scale = (gamma / jnp.sqrt(var + BN_EPS)).reshape(1, -1, 1, 1)
        shift = (beta - mean * gamma / jnp.sqrt(var + BN_EPS)).reshape(1, -1, 1, 1)
        return y * scale + shift

    identity, conv = x[:, :mid], x[:, mid:]
    conv = lax.conv_general_dilated(conv, w_dw, (1, 1), [(1, 1), (1, 1)],
                                    dimension_numbers=dn, feature_group_count=mid)
    conv = jax.nn.relu(bn(conv, bn1))
    conv = lax.conv_general_dilated(conv, w_pw, (1, 1), [(0, 0), (0, 0)],
                                    dimension_numbers=dn)
    conv = jax.nn.relu(bn(conv, bn2))
    out = jnp.concatenate([identity, conv], axis=1)
    out = out.reshape(B, 2, mid, H, W).transpose(0, 2, 1, 3, 4).reshape(B, C, H, W)
    out = lax.conv_general_dilated(out, w_fin, (1, 1), [(0, 0), (0, 0)],
                                   dimension_numbers=dn)
    out = jax.nn.relu(bn(out, bn3))
    return out


if __name__ == "__main__":
    B, C, H, W = 2, 8, 16, 16
    mid = C // 2

    key = jax.random.PRNGKey(0)
    kx, k1, k2, k3 = jax.random.split(key, 4)
    x = jax.random.normal(kx, (B, C, H, W), jnp.float32)

    # Deterministic kaiming_normal(mode='fan_out', nonlinearity='relu') init.
    w_dw = jax.random.normal(k1, (mid, 1, 3, 3), jnp.float32) * math.sqrt(2.0 / 9.0)
    w_pw = jax.random.normal(k2, (mid, mid, 1, 1), jnp.float32) * math.sqrt(2.0 / mid)
    w_fin = jax.random.normal(k3, (C, C, 1, 1), jnp.float32) * math.sqrt(2.0 / C)
    bn_init = lambda n: (jnp.ones(n, jnp.float32), jnp.zeros(n, jnp.float32),
                         jnp.zeros(n, jnp.float32), jnp.ones(n, jnp.float32))
    params = (w_dw, w_pw, w_fin, bn_init(mid), bn_init(mid), bn_init(C))

    ref = jax.block_until_ready(reference(x, params))

    # Exact f32 path: validates the fused structure against the reference.
    out_f32 = jax.block_until_ready(
        fast_conv_block(x, params, mxu_dtype=jnp.float32))
    assert out_f32.shape == (B, C, H, W)
    err_f32 = float(jnp.max(jnp.abs(out_f32 - ref)))
    assert jnp.allclose(out_f32, ref, atol=1e-4, rtol=1e-4), \
        f"f32 path max abs err {err_f32}"

    # Default perf path: bf16 MXU operands, f32 accumulation.
    out_bf16 = jax.block_until_ready(fast_conv_block(x, params))
    rel = float(jnp.linalg.norm(out_bf16 - ref) / jnp.linalg.norm(ref))
    assert rel < 2e-2, f"bf16 path relative error {rel}"

    print("KERNEL_OK")
</pallas_src>

<mosaic_0001>
module attributes {stable_mosaic.version = 11 : i64} {
  func.func @_fastconv_kernel(%arg0: i32, %arg1: memref<2x8x256xf32, #tpu.memory_space<vmem>>, %arg2: memref<4x512xf32, #tpu.memory_space<vmem>>, %arg3: memref<3x3x4x1xf32, #tpu.memory_space<vmem>>, %arg4: memref<4x1xf32, #tpu.memory_space<vmem>>, %arg5: memref<4x4xf32, #tpu.memory_space<vmem>>, %arg6: memref<4x1xf32, #tpu.memory_space<vmem>>, %arg7: memref<8x8xf32, #tpu.memory_space<vmem>>, %arg8: memref<8x1xf32, #tpu.memory_space<vmem>>, %arg9: memref<2x8x256xf32, #tpu.memory_space<vmem>>, %arg10: memref<8x512xf32, #tpu.memory_space<vmem>>) attributes {dimension_semantics = [#tpu.dimension_semantics<parallel>], iteration_bounds = array<i64: 1>, scalar_prefetch = 0 : i64, scratch_operands = 1 : i64, tpu.core_type = #tpu.core_type<tc>, window_params = [{transform_indices = @transform_0, window_bounds = array<i64: 2, 8, 256>}, {pipeline_mode = #tpu.pipeline_mode<synchronous>, transform_indices = @transform_1, window_bounds = array<i64: 4, 512>}, {pipeline_mode = #tpu.pipeline_mode<synchronous>, transform_indices = @transform_2, window_bounds = array<i64: 3, 3, 4, 1>}, {pipeline_mode = #tpu.pipeline_mode<synchronous>, transform_indices = @transform_3, window_bounds = array<i64: 4, 1>}, {pipeline_mode = #tpu.pipeline_mode<synchronous>, transform_indices = @transform_4, window_bounds = array<i64: 4, 4>}, {pipeline_mode = #tpu.pipeline_mode<synchronous>, transform_indices = @transform_5, window_bounds = array<i64: 4, 1>}, {pipeline_mode = #tpu.pipeline_mode<synchronous>, transform_indices = @transform_6, window_bounds = array<i64: 8, 8>}, {pipeline_mode = #tpu.pipeline_mode<synchronous>, transform_indices = @transform_7, window_bounds = array<i64: 8, 1>}, {transform_indices = @transform_8, window_bounds = array<i64: 2, 8, 256>}]} {
    %c0 = arith.constant 0 : index
    %c0_0 = arith.constant 0 : index
    %c0_1 = arith.constant 0 : index
    %0 = vector.load %arg1[%c0, %c0_0, %c0_1] : memref<2x8x256xf32, #tpu.memory_space<vmem>>, vector<1x8x256xf32>
    %1 = vector.shape_cast %0 : vector<1x8x256xf32> to vector<8x256xf32>
    %2 = vector.extract_strided_slice %1 {offsets = [0, 0], sizes = [4, 256], strides = [1, 1]} : vector<8x256xf32> to vector<4x256xf32>
    %c0_2 = arith.constant 0 : index
    %c0_3 = arith.constant 0 : index
    %3 = vector.load %arg10[%c0_2, %c0_3] : memref<8x512xf32, #tpu.memory_space<vmem>>, vector<4x256xf32>
    tpu.vector_store %arg10[%c0_2, %c0_3], %2 {strides = array<i32>} : memref<8x512xf32, #tpu.memory_space<vmem>>, vector<4x256xf32>,
    %4 = vector.extract_strided_slice %1 {offsets = [4, 0], sizes = [4, 256], strides = [1, 1]} : vector<8x256xf32> to vector<4x256xf32>
    %c1 = arith.constant 1 : index
    %c0_4 = arith.constant 0 : index
    %c0_5 = arith.constant 0 : index
    %5 = vector.load %arg1[%c1, %c0_4, %c0_5] : memref<2x8x256xf32, #tpu.memory_space<vmem>>, vector<1x8x256xf32>
    %6 = vector.shape_cast %5 : vector<1x8x256xf32> to vector<8x256xf32>
    %7 = vector.extract_strided_slice %6 {offsets = [0, 0], sizes = [4, 256], strides = [1, 1]} : vector<8x256xf32> to vector<4x256xf32>
    %c0_6 = arith.constant 0 : index
    %c256 = arith.constant 256 : index
    %8 = vector.load %arg10[%c0_6, %c256] : memref<8x512xf32, #tpu.memory_space<vmem>>, vector<4x256xf32>
    tpu.vector_store %arg10[%c0_6, %c256], %7 {strides = array<i32>} : memref<8x512xf32, #tpu.memory_space<vmem>>, vector<4x256xf32>,
    %9 = vector.extract_strided_slice %6 {offsets = [4, 0], sizes = [4, 256], strides = [1, 1]} : vector<8x256xf32> to vector<4x256xf32>
    %10 = tpu.concatenate %4, %9 in 1 : vector<4x256xf32>, vector<4x256xf32> -> vector<4x512xf32>
    %c0_7 = arith.constant 0 : index
    %c0_8 = arith.constant 0 : index
    %11 = vector.load %arg2[%c0_7, %c0_8] : memref<4x512xf32, #tpu.memory_space<vmem>>, vector<1x512xf32>
    %c1_9 = arith.constant 1 : index
    %c0_10 = arith.constant 0 : index
    %12 = vector.load %arg2[%c1_9, %c0_10] : memref<4x512xf32, #tpu.memory_space<vmem>>, vector<1x512xf32>
    %c2 = arith.constant 2 : index
    %c0_11 = arith.constant 0 : index
    %13 = vector.load %arg2[%c2, %c0_11] : memref<4x512xf32, #tpu.memory_space<vmem>>, vector<1x512xf32>
    %c3 = arith.constant 3 : index
    %c0_12 = arith.constant 0 : index
    %14 = vector.load %arg2[%c3, %c0_12] : memref<4x512xf32, #tpu.memory_space<vmem>>, vector<1x512xf32>
    %c1_i32 = arith.constant 1 : i32
    %15 = tpu.dynamic_rotate %10 by %c1_i32 dim 1 : vector<4x512xf32>, i32 -> vector<4x512xf32>
    %16 = vector.broadcast %11 : vector<1x512xf32> to vector<4x512xf32>
    %17 = arith.mulf %16, %15 : vector<4x512xf32>
    %c511_i32 = arith.constant 511 : i32
    %18 = tpu.dynamic_rotate %10 by %c511_i32 dim 1 : vector<4x512xf32>, i32 -> vector<4x512xf32>
    %19 = vector.broadcast %12 : vector<1x512xf32> to vector<4x512xf32>
    %20 = arith.mulf %19, %18 : vector<4x512xf32>
    %c0_13 = arith.constant 0 : index
    %c0_14 = arith.constant 0 : index
    %c0_15 = arith.constant 0 : index
    %c0_16 = arith.constant 0 : index
    %21 = vector.load %arg3[%c0_13, %c0_14, %c0_15, %c0_16] : memref<3x3x4x1xf32, #tpu.memory_space<vmem>>, vector<1x1x4x1xf32>
    %22 = vector.shape_cast %21 : vector<1x1x4x1xf32> to vector<4x1xf32>
    %23 = vector.broadcast %22 : vector<4x1xf32> to vector<4x512xf32>
    %24 = arith.mulf %23, %17 : vector<4x512xf32>
    %c0_17 = arith.constant 0 : index
    %c1_18 = arith.constant 1 : index
    %c0_19 = arith.constant 0 : index
    %c0_20 = arith.constant 0 : index
    %25 = vector.load %arg3[%c0_17, %c1_18, %c0_19, %c0_20] : memref<3x3x4x1xf32, #tpu.memory_space<vmem>>, vector<1x1x4x1xf32>
    %26 = vector.shape_cast %25 : vector<1x1x4x1xf32> to vector<4x1xf32>
    %27 = vector.broadcast %26 : vector<4x1xf32> to vector<4x512xf32>
    %28 = arith.mulf %27, %10 : vector<4x512xf32>
    %29 = arith.addf %24, %28 : vector<4x512xf32>
    %c0_21 = arith.constant 0 : index
    %c2_22 = arith.constant 2 : index
    %c0_23 = arith.constant 0 : index
    %c0_24 = arith.constant 0 : index
    %30 = vector.load %arg3[%c0_21, %c2_22, %c0_23, %c0_24] : memref<3x3x4x1xf32, #tpu.memory_space<vmem>>, vector<1x1x4x1xf32>
    %31 = vector.shape_cast %30 : vector<1x1x4x1xf32> to vector<4x1xf32>
    %32 = vector.broadcast %31 : vector<4x1xf32> to vector<4x512xf32>
    %33 = arith.mulf %32, %20 : vector<4x512xf32>
    %34 = arith.addf %29, %33 : vector<4x512xf32>
    %c16_i32 = arith.constant 16 : i32
    %35 = tpu.dynamic_rotate %34 by %c16_i32 dim 1 : vector<4x512xf32>, i32 -> vector<4x512xf32>
    %36 = vector.broadcast %13 : vector<1x512xf32> to vector<4x512xf32>
    %37 = arith.mulf %36, %35 : vector<4x512xf32>
    %c2_25 = arith.constant 2 : index
    %c0_26 = arith.constant 0 : index
    %c0_27 = arith.constant 0 : index
    %c0_28 = arith.constant 0 : index
    %38 = vector.load %arg3[%c2_25, %c0_26, %c0_27, %c0_28] : memref<3x3x4x1xf32, #tpu.memory_space<vmem>>, vector<1x1x4x1xf32>
    %39 = vector.shape_cast %38 : vector<1x1x4x1xf32> to vector<4x1xf32>
    %40 = vector.broadcast %39 : vector<4x1xf32> to vector<4x512xf32>
    %41 = arith.mulf %40, %17 : vector<4x512xf32>
    %c2_29 = arith.constant 2 : index
    %c1_30 = arith.constant 1 : index
    %c0_31 = arith.constant 0 : index
    %c0_32 = arith.constant 0 : index
    %42 = vector.load %arg3[%c2_29, %c1_30, %c0_31, %c0_32] : memref<3x3x4x1xf32, #tpu.memory_space<vmem>>, vector<1x1x4x1xf32>
    %43 = vector.shape_cast %42 : vector<1x1x4x1xf32> to vector<4x1xf32>
    %44 = vector.broadcast %43 : vector<4x1xf32> to vector<4x512xf32>
    %45 = arith.mulf %44, %10 : vector<4x512xf32>
    %46 = arith.addf %41, %45 : vector<4x512xf32>
    %c2_33 = arith.constant 2 : index
    %c2_34 = arith.constant 2 : index
    %c0_35 = arith.constant 0 : index
    %c0_36 = arith.constant 0 : index
    %47 = vector.load %arg3[%c2_33, %c2_34, %c0_35, %c0_36] : memref<3x3x4x1xf32, #tpu.memory_space<vmem>>, vector<1x1x4x1xf32>
    %48 = vector.shape_cast %47 : vector<1x1x4x1xf32> to vector<4x1xf32>
    %49 = vector.broadcast %48 : vector<4x1xf32> to vector<4x512xf32>
    %50 = arith.mulf %49, %20 : vector<4x512xf32>
    %51 = arith.addf %46, %50 : vector<4x512xf32>
    %c496_i32 = arith.constant 496 : i32
    %52 = tpu.dynamic_rotate %51 by %c496_i32 dim 1 : vector<4x512xf32>, i32 -> vector<4x512xf32>
    %53 = vector.broadcast %14 : vector<1x512xf32> to vector<4x512xf32>
    %54 = arith.mulf %53, %52 : vector<4x512xf32>
    %c1_37 = arith.constant 1 : index
    %c0_38 = arith.constant 0 : index
    %c0_39 = arith.constant 0 : index
    %c0_40 = arith.constant 0 : index
    %55 = vector.load %arg3[%c1_37, %c0_38, %c0_39, %c0_40] : memref<3x3x4x1xf32, #tpu.memory_space<vmem>>, vector<1x1x4x1xf32>
    %56 = vector.shape_cast %55 : vector<1x1x4x1xf32> to vector<4x1xf32>
    %57 = vector.broadcast %56 : vector<4x1xf32> to vector<4x512xf32>
    %58 = arith.mulf %57, %17 : vector<4x512xf32>
    %c1_41 = arith.constant 1 : index
    %c1_42 = arith.constant 1 : index
    %c0_43 = arith.constant 0 : index
    %c0_44 = arith.constant 0 : index
    %59 = vector.load %arg3[%c1_41, %c1_42, %c0_43, %c0_44] : memref<3x3x4x1xf32, #tpu.memory_space<vmem>>, vector<1x1x4x1xf32>
    %60 = vector.shape_cast %59 : vector<1x1x4x1xf32> to vector<4x1xf32>
    %61 = vector.broadcast %60 : vector<4x1xf32> to vector<4x512xf32>
    %62 = arith.mulf %61, %10 : vector<4x512xf32>
    %63 = arith.addf %58, %62 : vector<4x512xf32>
    %c1_45 = arith.constant 1 : index
    %c2_46 = arith.constant 2 : index
    %c0_47 = arith.constant 0 : index
    %c0_48 = arith.constant 0 : index
    %64 = vector.load %arg3[%c1_45, %c2_46, %c0_47, %c0_48] : memref<3x3x4x1xf32, #tpu.memory_space<vmem>>, vector<1x1x4x1xf32>
    %65 = vector.shape_cast %64 : vector<1x1x4x1xf32> to vector<4x1xf32>
    %66 = vector.broadcast %65 : vector<4x1xf32> to vector<4x512xf32>
    %67 = arith.mulf %66, %20 : vector<4x512xf32>
    %68 = arith.addf %63, %67 : vector<4x512xf32>
    %69 = arith.addf %37, %68 : vector<4x512xf32>
    %70 = arith.addf %69, %54 : vector<4x512xf32>
    %c0_49 = arith.constant 0 : index
    %c0_50 = arith.constant 0 : index
    %71 = vector.load %arg4[%c0_49, %c0_50] : memref<4x1xf32, #tpu.memory_space<vmem>>, vector<4x1xf32>
    %72 = vector.broadcast %71 : vector<4x1xf32> to vector<4x512xf32>
    %73 = arith.addf %70, %72 : vector<4x512xf32>
    %cst = arith.constant 0.000000e+00 : f32
    %74 = vector.broadcast %cst : f32 to vector<4x512xf32>
    %75 = arith.maximumf %73, %74 : vector<4x512xf32>
    %c0_51 = arith.constant 0 : index
    %c0_52 = arith.constant 0 : index
    %76 = vector.load %arg5[%c0_51, %c0_52] : memref<4x4xf32, #tpu.memory_space<vmem>>, vector<4x4xf32>
    %cst_53 = arith.constant dense<0.000000e+00> : vector<4x512xf32>
    %77 = tpu.matmul %76, %75, %cst_53 {dimension_numbers = #tpu.dot_dimension_numbers<[1], [0], [0], [1], [0, 0, 1, 1], [], []>} : vector<4x4xf32>, vector<4x512xf32>, vector<4x512xf32> -> vector<4x512xf32>
    %c0_54 = arith.constant 0 : index
    %c0_55 = arith.constant 0 : index
    %78 = vector.load %arg6[%c0_54, %c0_55] : memref<4x1xf32, #tpu.memory_space<vmem>>, vector<4x1xf32>
    %79 = vector.broadcast %78 : vector<4x1xf32> to vector<4x512xf32>
    %80 = arith.addf %77, %79 : vector<4x512xf32>
    %cst_56 = arith.constant 0.000000e+00 : f32
    %81 = vector.broadcast %cst_56 : f32 to vector<4x512xf32>
    %82 = arith.maximumf %80, %81 : vector<4x512xf32>
    %c4 = arith.constant 4 : index
    %c0_57 = arith.constant 0 : index
    %83 = vector.load %arg10[%c4, %c0_57] : memref<8x512xf32, #tpu.memory_space<vmem>>, vector<4x512xf32>
    tpu.vector_store %arg10[%c4, %c0_57], %82 {strides = array<i32>} : memref<8x512xf32, #tpu.memory_space<vmem>>, vector<4x512xf32>,
    %c0_58 = arith.constant 0 : index
    %c0_59 = arith.constant 0 : index
    %84 = vector.load %arg7[%c0_58, %c0_59] : memref<8x8xf32, #tpu.memory_space<vmem>>, vector<8x8xf32>
    %c0_60 = arith.constant 0 : index
    %c0_61 = arith.constant 0 : index
    %85 = vector.load %arg10[%c0_60, %c0_61] : memref<8x512xf32, #tpu.memory_space<vmem>>, vector<8x512xf32>
    %cst_62 = arith.constant dense<0.000000e+00> : vector<8x512xf32>
    %86 = tpu.matmul %84, %85, %cst_62 {dimension_numbers = #tpu.dot_dimension_numbers<[1], [0], [0], [1], [0, 0, 1, 1], [], []>} : vector<8x8xf32>, vector<8x512xf32>, vector<8x512xf32> -> vector<8x512xf32>
    %c0_63 = arith.constant 0 : index
    %c0_64 = arith.constant 0 : index
    %87 = vector.load %arg8[%c0_63, %c0_64] : memref<8x1xf32, #tpu.memory_space<vmem>>, vector<8x1xf32>
    %88 = vector.broadcast %87 : vector<8x1xf32> to vector<8x512xf32>
    %89 = arith.addf %86, %88 : vector<8x512xf32>
    %cst_65 = arith.constant 0.000000e+00 : f32
    %90 = vector.broadcast %cst_65 : f32 to vector<8x512xf32>
    %91 = arith.maximumf %89, %90 : vector<8x512xf32>
    %92 = vector.extract_strided_slice %91 {offsets = [0, 0], sizes = [8, 256], strides = [1, 1]} : vector<8x512xf32> to vector<8x256xf32>
    %c0_66 = arith.constant 0 : index
    %c0_67 = arith.constant 0 : index
    %c0_68 = arith.constant 0 : index
    %93 = vector.load %arg9[%c0_66, %c0_67, %c0_68] : memref<2x8x256xf32, #tpu.memory_space<vmem>>, vector<1x8x256xf32>
    %94 = vector.shape_cast %93 : vector<1x8x256xf32> to vector<8x256xf32>
    %95 = vector.shape_cast %92 : vector<8x256xf32> to vector<1x8x256xf32>
    tpu.vector_store %arg9[%c0_66, %c0_67, %c0_68], %95 {strides = array<i32>} : memref<2x8x256xf32, #tpu.memory_space<vmem>>, vector<1x8x256xf32>,
    %96 = vector.extract_strided_slice %91 {offsets = [0, 256], sizes = [8, 256], strides = [1, 1]} : vector<8x512xf32> to vector<8x256xf32>
    %c1_69 = arith.constant 1 : index
    %c0_70 = arith.constant 0 : index
    %c0_71 = arith.constant 0 : index
    %97 = vector.load %arg9[%c1_69, %c0_70, %c0_71] : memref<2x8x256xf32, #tpu.memory_space<vmem>>, vector<1x8x256xf32>
    %98 = vector.shape_cast %97 : vector<1x8x256xf32> to vector<8x256xf32>
    %99 = vector.shape_cast %96 : vector<8x256xf32> to vector<1x8x256xf32>
    tpu.vector_store %arg9[%c1_69, %c0_70, %c0_71], %99 {strides = array<i32>} : memref<2x8x256xf32, #tpu.memory_space<vmem>>, vector<1x8x256xf32>,
    return
  }
  func.func @transform_0(%arg0: i32) -> (i32, i32, i32) {
    %c0_i32 = arith.constant 0 : i32
    %c0_i32_0 = arith.constant 0 : i32
    %c0_i32_1 = arith.constant 0 : i32
    return %arg0, %c0_i32, %c0_i32_0 : i32, i32, i32
  }
  func.func @transform_1(%arg0: i32) -> (i32, i32) {
    %c0_i32 = arith.constant 0 : i32
    %c0_i32_0 = arith.constant 0 : i32
    %c0_i32_1 = arith.constant 0 : i32
    return %c0_i32, %c0_i32_0 : i32, i32
  }
  func.func @transform_2(%arg0: i32) -> (i32, i32, i32, i32) {
    %c0_i32 = arith.constant 0 : i32
    %c0_i32_0 = arith.constant 0 : i32
    %c0_i32_1 = arith.constant 0 : i32
    %c0_i32_2 = arith.constant 0 : i32
    %c0_i32_3 = arith.constant 0 : i32
    return %c0_i32, %c0_i32_0, %c0_i32_1, %c0_i32_2 : i32, i32, i32, i32
  }
  func.func @transform_3(%arg0: i32) -> (i32, i32) {
    %c0_i32 = arith.constant 0 : i32
    %c0_i32_0 = arith.constant 0 : i32
    %c0_i32_1 = arith.constant 0 : i32
    return %c0_i32, %c0_i32_0 : i32, i32
  }
  func.func @transform_4(%arg0: i32) -> (i32, i32) {
    %c0_i32 = arith.constant 0 : i32
    %c0_i32_0 = arith.constant 0 : i32
    %c0_i32_1 = arith.constant 0 : i32
    return %c0_i32, %c0_i32_0 : i32, i32
  }
  func.func @transform_5(%arg0: i32) -> (i32, i32) {
    %c0_i32 = arith.constant 0 : i32
    %c0_i32_0 = arith.constant 0 : i32
    %c0_i32_1 = arith.constant 0 : i32
    return %c0_i32, %c0_i32_0 : i32, i32
  }
  func.func @transform_6(%arg0: i32) -> (i32, i32) {
    %c0_i32 = arith.constant 0 : i32
    %c0_i32_0 = arith.constant 0 : i32
    %c0_i32_1 = arith.constant 0 : i32
    return %c0_i32, %c0_i32_0 : i32, i32
  }
  func.func @transform_7(%arg0: i32) -> (i32, i32) {
    %c0_i32 = arith.constant 0 : i32
    %c0_i32_0 = arith.constant 0 : i32
    %c0_i32_1 = arith.constant 0 : i32
    return %c0_i32, %c0_i32_0 : i32, i32
  }
  func.func @transform_8(%arg0: i32) -> (i32, i32, i32) {
    %c0_i32 = arith.constant 0 : i32
    %c0_i32_0 = arith.constant 0 : i32
    %c0_i32_1 = arith.constant 0 : i32
    return %arg0, %c0_i32, %c0_i32_0 : i32, i32, i32
  }
}

</mosaic_0001>

<llo_original>
// kernel: tpu_custom_call.1
$region0: #{tpu_custom_call.1}
  #allocation0 [shape = 'u32[]', space=smem, size = 0x4, offset = 0x4, fixed_abs, tag = 'smem constant byte address 0x4 - core index']
  #allocation1 [shape = 'u32[144,128]{1,0:T(1,128)}', space=vmem, size = 0x12000, scoped, tag = 'internal scratch']
  #allocation2 [shape = 'f32[8,512]{1,0:T(8,128)}', space=vmem, size = 0x4000, scoped, tag = 'scratch operand']
  %s0 = inlined_call_operand.vmem [shape: f32[2,8,256], index: 0, kind: input, shape index: {}]
  %s1 = inlined_call_operand.vmem [shape: f32[4,512], index: 1, kind: input, shape index: {}]
  %s2 = inlined_call_operand.vmem [shape: f32[3,3,4,1], index: 2, kind: input, shape index: {}]
  %s3 = inlined_call_operand.vmem [shape: f32[4,1], index: 3, kind: input, shape index: {}]
  %s4 = inlined_call_operand.vmem [shape: f32[4,4], index: 4, kind: input, shape index: {}]
  %s5 = inlined_call_operand.vmem [shape: f32[4,1], index: 5, kind: input, shape index: {}]
  %s6 = inlined_call_operand.vmem [shape: f32[8,8], index: 6, kind: input, shape index: {}]
  %s7 = inlined_call_operand.vmem [shape: f32[8,1], index: 7, kind: input, shape index: {}]
  %s8 = inlined_call_operand.hbm [shape: f32[2,8,256], index: 8, kind: output, shape index: {}]
  %s9 = sld [smem:[#allocation0]]
  $region42: #{tpu_custom_call.1} parent=0
    _
  %s11 = ssub.s32 1, %s9
  %s12 = scalar_select 0, %s11, %s9
  $region1: #{tpu_custom_call.1} parent=0
    #allocation3 [shape = 'u8[16384]{0}', space=vmem, size = 0x4000, scoped, tag = 'output window, operand 0, single buffered']
    #allocation4 [shape = 's32[1]{0}', space=sflag, size = 0x4, scoped, tag = 'scoped memory for tpu_custom_call.1']
    %13 = vsyncpa [#allocation4], 0
    // Predicated region
    $region2: #{tpu_custom_call.1} parent=1 // pred_check
      _
    $region3: #{tpu_custom_call.1} parent=1 // pred_check_branch
      %15 = sbr.rel (0) target = $region5
    $region4: #{tpu_custom_call.1} parent=1 // pred_region
      _
    $region5: #{tpu_custom_call.1} parent=1 // pred_fallthru
      _
    // Predicated region
    $region6: #{tpu_custom_call.1} parent=1 // pred_check
      _
    $region7: #{tpu_custom_call.1} parent=1 // pred_check_branch
      %17 = sbr.rel (0) target = $region9
    $region8: #{tpu_custom_call.1} parent=1 // pred_region
      _
    $region9: #{tpu_custom_call.1} parent=1 // pred_fallthru
      _
    // Predicated region
    $region10: #{tpu_custom_call.1} parent=1 // pred_check
      _
    $region11: #{tpu_custom_call.1} parent=1 // pred_check_branch
      %19 = sbr.rel (0) target = $region13
    $region12: #{tpu_custom_call.1} parent=1 // pred_region
      _
    $region13: #{tpu_custom_call.1} parent=1 // pred_fallthru
      _
    // Predicated region
    $region14: #{tpu_custom_call.1} parent=1 // pred_check
      _
    $region15: #{tpu_custom_call.1} parent=1 // pred_check_branch
      %21 = sbr.rel (0) target = $region17
    $region16: #{tpu_custom_call.1} parent=1 // pred_region
      _
    $region17: #{tpu_custom_call.1} parent=1 // pred_fallthru
      _
    // Predicated region
    $region18: #{tpu_custom_call.1} parent=1 // pred_check
      _
    $region19: #{tpu_custom_call.1} parent=1 // pred_check_branch
      %23 = sbr.rel (0) target = $region21
    $region20: #{tpu_custom_call.1} parent=1 // pred_region
      _
    $region21: #{tpu_custom_call.1} parent=1 // pred_fallthru
      _
    // Predicated region
    $region22: #{tpu_custom_call.1} parent=1 // pred_check
      _
    $region23: #{tpu_custom_call.1} parent=1 // pred_check_branch
      %25 = sbr.rel (0) target = $region25
    $region24: #{tpu_custom_call.1} parent=1 // pred_region
      _
    $region25: #{tpu_custom_call.1} parent=1 // pred_fallthru
      _
    // Predicated region
    $region26: #{tpu_custom_call.1} parent=1 // pred_check
      _
    $region27: #{tpu_custom_call.1} parent=1 // pred_check_branch
      %27 = sbr.rel (0) target = $region29
    $region28: #{tpu_custom_call.1} parent=1 // pred_region
      _
    $region29: #{tpu_custom_call.1} parent=1 // pred_fallthru
      _
    // Predicated region
    $region30: #{tpu_custom_call.1} parent=1 // pred_check
      _
    $region31: #{tpu_custom_call.1} parent=1 // pred_check_branch
      %29 = sbr.rel (0) target = $region33
    $region32: #{tpu_custom_call.1} parent=1 // pred_region
      _
    $region33: #{tpu_custom_call.1} parent=1 // pred_fallthru
      _
    %v30 = vld [vmem:[%s0] sm:$0xff]
    %v31 = vld [vmem:[%s0 + $0x8] sm:$0xff]
    %32 = vst [vmem:[#allocation2] sm:$0xf] %v30
    %33 = vst [vmem:[#allocation2 + $0x8] sm:$0xf] %v31
    %s34 = scalar_lea.vmem %s0, 16
    %v35 = vld [vmem:[%s34] sm:$0xff]
    %v36 = vld [vmem:[%s34 + $0x8] sm:$0xff]
    %37 = vst [vmem:[#allocation2 + $0x10] sm:$0xf] %v35
    %38 = vst [vmem:[#allocation2 + $0x18] sm:$0xf] %v36
    %v39 = vld [vmem:[%s1] ss:$4 sm:$0xf]
    %s40 = scalar_lea.vmem %s1, 1
    %v41 = vld [vmem:[%s40] ss:$4 sm:$0xf]
    %s42 = scalar_lea.vmem %s1, 2
    %v43 = vld [vmem:[%s42] ss:$4 sm:$0xf]
    %s44 = scalar_lea.vmem %s1, 3
    %v45 = vld [vmem:[%s44] ss:$4 sm:$0xf]
    %v50 = vrot.slane %v30, 4
    %v51 = vrot.slane %v31, 4
    %v52 = vrot.slane %v35, 4
    %v53 = vrot.slane %v36, 4
    %58 = vrot.lane.b32.xlu0 %v50, 1
    %v59 = vpop.permute.xlu0 %58
    %60 = vrot.lane.b32.xlu0 %v51, 1
    %v61 = vpop.permute.xlu0 %60
    %62 = vrot.lane.b32.xlu0 %v52, 1
    %v63 = vpop.permute.xlu0 %62
    %64 = vrot.lane.b32.xlu0 %v53, 1
    %v65 = vpop.permute.xlu0 %64
    %v66 = vlaneseq
    %v67 = vand.u32 %v66, 127
    %vm68 = vcmp.lt.s32.totalorder %v67, 1
    %v69 = vsel %vm68, %v63, %v65
    %v70 = vsel %vm68, %v61, %v63
    %v71 = vsel %vm68, %v59, %v61
    %v72 = vsel %vm68, %v65, %v59
    %v74 = vlaneseq
    %v75 = vshrl.u32 %v74, 7
    %v76 = vsub.s32 0, %v75
    %v77 = vrot.slane %v39, %v76
    %v78 = vlaneseq
    %v79 = vshrl.u32 %v78, 7
    %v80 = vsub.s32 1, %v79
    %v81 = vrot.slane %v39, %v80
    %v82 = vlaneseq
    %v83 = vshrl.u32 %v82, 7
    %v84 = vsub.s32 2, %v83
    %v85 = vrot.slane %v39, %v84
    %v86 = vlaneseq
    %v87 = vshrl.u32 %v86, 7
    %v88 = vsub.s32 3, %v87
    %v89 = vrot.slane %v39, %v88
    %v94 = vmul.f32 %v77, %v72
    %v95 = vmul.f32 %v81, %v71
    %v96 = vmul.f32 %v85, %v70
    %v97 = vmul.f32 %v89, %v69
    %98 = vrot.lane.b32.xlu0 %v50, 127
    %v99 = vpop.permute.xlu0 %98
    %100 = vrot.lane.b32.xlu0 %v51, 127
    %v101 = vpop.permute.xlu0 %100
    %102 = vrot.lane.b32.xlu0 %v52, 127
    %v103 = vpop.permute.xlu0 %102
    %104 = vrot.lane.b32.xlu0 %v53, 127
    %v105 = vpop.permute.xlu0 %104
    %vm106 = vcmp.lt.s32.totalorder %v67, 127
    %v107 = vsel %vm106, %v103, %v105
    %v108 = vsel %vm106, %v101, %v103
    %v109 = vsel %vm106, %v99, %v101
    %v110 = vsel %vm106, %v105, %v99
    %v112 = vlaneseq
    %v113 = vshrl.u32 %v112, 7
    %v114 = vsub.s32 0, %v113
    %v115 = vrot.slane %v41, %v114
    %v116 = vlaneseq
    %v117 = vshrl.u32 %v116, 7
    %v118 = vsub.s32 1, %v117
    %v119 = vrot.slane %v41, %v118
    %v120 = vlaneseq
    %v121 = vshrl.u32 %v120, 7
    %v122 = vsub.s32 2, %v121
    %v123 = vrot.slane %v41, %v122
    %v124 = vlaneseq
    %v125 = vshrl.u32 %v124, 7
    %v126 = vsub.s32 3, %v125
    %v127 = vrot.slane %v41, %v126
    %v132 = vmul.f32 %v115, %v109
    %v133 = vmul.f32 %v119, %v108
    %v134 = vmul.f32 %v123, %v107
    %v135 = vmul.f32 %v127, %v110
    %v136 = vld [vmem:[%s2] sm:$0xf]
    %138 = vset.pattern.permute.xlu0 0
    %139 = vperm.xlu0 %138, %v136
    %v140 = vpop.permute.xlu0 %139
    %v142 = vmul.f32 %v140, %v94
    %v143 = vmul.f32 %v140, %v95
    %v144 = vmul.f32 %v140, %v96
    %v145 = vmul.f32 %v140, %v97
    %s146 = scalar_lea.vmem %s2, 4
    %v147 = vld [vmem:[%s146] sm:$0xf]
    %149 = vset.pattern.permute.xlu0 0
    %150 = vperm.xlu0 %149, %v147
    %v151 = vpop.permute.xlu0 %150
    %v153 = vmul.f32 %v151, %v50
    %v154 = vmul.f32 %v151, %v51
    %v155 = vmul.f32 %v151, %v52
    %v156 = vmul.f32 %v151, %v53
    %v157 = vadd.f32 %v142, %v153
    %v158 = vadd.f32 %v143, %v154
    %v159 = vadd.f32 %v144, %v155
    %v160 = vadd.f32 %v145, %v156
    %s161 = scalar_lea.vmem %s2, 8
    %v162 = vld [vmem:[%s161] sm:$0xf]
    %164 = vset.pattern.permute.xlu0 0
    %165 = vperm.xlu0 %164, %v162
    %v166 = vpop.permute.xlu0 %165
    %v168 = vmul.f32 %v166, %v132
    %v169 = vmul.f32 %v166, %v133
    %v170 = vmul.f32 %v166, %v134
    %v171 = vmul.f32 %v166, %v135
    %v172 = vadd.f32 %v157, %v168
    %v173 = vadd.f32 %v158, %v169
    %v174 = vadd.f32 %v159, %v170
    %v175 = vadd.f32 %v160, %v171
    %176 = vrot.lane.b32.xlu0 %v172, 16
    %v177 = vpop.permute.xlu0 %176
    %178 = vrot.lane.b32.xlu0 %v173, 16
    %v179 = vpop.permute.xlu0 %178
    %180 = vrot.lane.b32.xlu0 %v174, 16
    %v181 = vpop.permute.xlu0 %180
    %182 = vrot.lane.b32.xlu0 %v175, 16
    %v183 = vpop.permute.xlu0 %182
    %vm184 = vcmp.lt.s32.totalorder %v67, 16
    %v185 = vsel %vm184, %v181, %v183
    %v186 = vsel %vm184, %v179, %v181
    %v187 = vsel %vm184, %v177, %v179
    %v188 = vsel %vm184, %v183, %v177
    %v190 = vlaneseq
    %v191 = vshrl.u32 %v190, 7
    %v192 = vsub.s32 0, %v191
    %v193 = vrot.slane %v43, %v192
    %v194 = vlaneseq
    %v195 = vshrl.u32 %v194, 7
    %v196 = vsub.s32 1, %v195
    %v197 = vrot.slane %v43, %v196
    %v198 = vlaneseq
    %v199 = vshrl.u32 %v198, 7
    %v200 = vsub.s32 2, %v199
    %v201 = vrot.slane %v43, %v200
    %v202 = vlaneseq
    %v203 = vshrl.u32 %v202, 7
    %v204 = vsub.s32 3, %v203
    %v205 = vrot.slane %v43, %v204
    %v210 = vmul.f32 %v193, %v188
    %v211 = vmul.f32 %v197, %v187
    %v212 = vmul.f32 %v201, %v186
    %v213 = vmul.f32 %v205, %v185
    %s214 = scalar_lea.vmem %s2, 24
    %v215 = vld [vmem:[%s214] sm:$0xf]
    %217 = vset.pattern.permute.xlu0 0
    %218 = vperm.xlu0 %217, %v215
    %v219 = vpop.permute.xlu0 %218
    %v221 = vmul.f32 %v219, %v94
    %v222 = vmul.f32 %v219, %v95
    %v223 = vmul.f32 %v219, %v96
    %v224 = vmul.f32 %v219, %v97
    %s225 = scalar_lea.vmem %s2, 28
    %v226 = vld [vmem:[%s225] sm:$0xf]
    %228 = vset.pattern.permute.xlu0 0
    %229 = vperm.xlu0 %228, %v226
    %v230 = vpop.permute.xlu0 %229
    %v232 = vmul.f32 %v230, %v50
    %v233 = vmul.f32 %v230, %v51
    %v234 = vmul.f32 %v230, %v52
    %v235 = vmul.f32 %v230, %v53
    %v236 = vadd.f32 %v221, %v232
    %v237 = vadd.f32 %v222, %v233
    %v238 = vadd.f32 %v223, %v234
    %v239 = vadd.f32 %v224, %v235
    %s240 = scalar_lea.vmem %s2, 32
    %v241 = vld [vmem:[%s240] sm:$0xf]
    %243 = vset.pattern.permute.xlu0 0
    %244 = vperm.xlu0 %243, %v241
    %v245 = vpop.permute.xlu0 %244
    %v247 = vmul.f32 %v245, %v132
    %v248 = vmul.f32 %v245, %v133
    %v249 = vmul.f32 %v245, %v134
    %v250 = vmul.f32 %v245, %v135
    %v251 = vadd.f32 %v236, %v247
    %v252 = vadd.f32 %v237, %v248
    %v253 = vadd.f32 %v238, %v249
    %v254 = vadd.f32 %v239, %v250
    %255 = vrot.lane.b32.xlu0 %v251, 112
    %v256 = vpop.permute.xlu0 %255
    %257 = vrot.lane.b32.xlu0 %v252, 112
    %v258 = vpop.permute.xlu0 %257
    %259 = vrot.lane.b32.xlu0 %v253, 112
    %v260 = vpop.permute.xlu0 %259
    %261 = vrot.lane.b32.xlu0 %v254, 112
    %v262 = vpop.permute.xlu0 %261
    %vm263 = vcmp.lt.s32.totalorder %v67, 112
    %v264 = vsel %vm263, %v260, %v262
    %v265 = vsel %vm263, %v258, %v260
    %v266 = vsel %vm263, %v256, %v258
    %v267 = vsel %vm263, %v262, %v256
    %v269 = vlaneseq
    %v270 = vshrl.u32 %v269, 7
    %v271 = vsub.s32 0, %v270
    %v272 = vrot.slane %v45, %v271
    %v273 = vlaneseq
    %v274 = vshrl.u32 %v273, 7
    %v275 = vsub.s32 1, %v274
    %v276 = vrot.slane %v45, %v275
    %v277 = vlaneseq
    %v278 = vshrl.u32 %v277, 7
    %v279 = vsub.s32 2, %v278
    %v280 = vrot.slane %v45, %v279
    %v281 = vlaneseq
    %v282 = vshrl.u32 %v281, 7
    %v283 = vsub.s32 3, %v282
    %v284 = vrot.slane %v45, %v283
    %v289 = vmul.f32 %v272, %v266
    %v290 = vmul.f32 %v276, %v265
    %v291 = vmul.f32 %v280, %v264
    %v292 = vmul.f32 %v284, %v267
    %s293 = scalar_lea.vmem %s2, 12
    %v294 = vld [vmem:[%s293] sm:$0xf]
    %296 = vset.pattern.permute.xlu0 0
    %297 = vperm.xlu0 %296, %v294
    %v298 = vpop.permute.xlu0 %297
    %v300 = vmul.f32 %v298, %v94
    %v301 = vmul.f32 %v298, %v95
    %v302 = vmul.f32 %v298, %v96
    %v303 = vmul.f32 %v298, %v97
    %s304 = scalar_lea.vmem %s2, 16
    %v305 = vld [vmem:[%s304] sm:$0xf]
    %307 = vset.pattern.permute.xlu0 0
    %308 = vperm.xlu0 %307, %v305
    %v309 = vpop.permute.xlu0 %308
    %v311 = vmul.f32 %v309, %v50
    %v312 = vmul.f32 %v309, %v51
    %v313 = vmul.f32 %v309, %v52
    %v314 = vmul.f32 %v309, %v53
    %v315 = vadd.f32 %v300, %v311
    %v316 = vadd.f32 %v301, %v312
    %v317 = vadd.f32 %v302, %v313
    %v318 = vadd.f32 %v303, %v314
    %s319 = scalar_lea.vmem %s2, 20
    %v320 = vld [vmem:[%s319] sm:$0xf]
    %322 = vset.pattern.permute.xlu0 0
    %323 = vperm.xlu0 %322, %v320
    %v324 = vpop.permute.xlu0 %323
    %v326 = vmul.f32 %v324, %v132
    %v327 = vmul.f32 %v324, %v133
    %v328 = vmul.f32 %v324, %v134
    %v329 = vmul.f32 %v324, %v135
    %v330 = vadd.f32 %v315, %v326
    %v331 = vadd.f32 %v316, %v327
    %v332 = vadd.f32 %v317, %v328
    %v333 = vadd.f32 %v318, %v329
    %v334 = vadd.f32 %v210, %v330
    %v335 = vadd.f32 %v211, %v331
    %v336 = vadd.f32 %v212, %v332
    %v337 = vadd.f32 %v213, %v333
    %v338 = vadd.f32 %v334, %v289
    %v339 = vadd.f32 %v335, %v290
    %v340 = vadd.f32 %v336, %v291
    %v341 = vadd.f32 %v337, %v292
    %v342 = vld [vmem:[%s3] sm:$0xf]
    %344 = vset.pattern.permute.xlu0 0
    %345 = vperm.xlu0 %344, %v342
    %v346 = vpop.permute.xlu0 %345
    %v348 = vadd.f32 %v338, %v346
    %v349 = vadd.f32 %v339, %v346
    %v350 = vadd.f32 %v340, %v346
    %v351 = vadd.f32 %v341, %v346
    %v352 = vmax.f32 %v348, 0.0
    %v353 = vmax.f32 %v349, 0.0
    %v354 = vmax.f32 %v350, 0.0
    %v355 = vmax.f32 %v351, 0.0
    %v356 = vld [vmem:[%s4] sm:$0xf]
    %v357 = vld [vmem:[%s5] sm:$0xf]
    %359 = vset.pattern.permute.xlu0 0
    %360 = vperm.xlu0 %359, %v357
    %v361 = vpop.permute.xlu0 %360
    %vm363 = vcmask 31744
    %v365 = vsel %vm363, %v356, 0
    %vm367 = vcmask 1043456
    %v369 = vsel %vm367, %v352, 0
    %v372 = vsel %vm367, %v353, 0
    %v375 = vsel %vm367, %v354, 0
    %v378 = vsel %vm367, %v355, 0
    %380 = vmatprep.subr.mxu0 %v372
    %381 = vmatpush1.msra.mxu0 %v369
    %382 = vmatprep.subr.mxu0 0.0
    %383 = vmatpush1.msra.mxu0 0.0
    %384 = vmatprep.subr.mxu0 0.0
    %385 = vmatpush1.msra.mxu0 0.0
    %386 = vmatprep.subr.mxu0 0.0
    %387 = vmatpush1.msra.mxu0 0.0
    %388 = vmatprep.subr.mxu0 0.0
    %389 = vmatpush1.msra.mxu0 0.0
    %390 = vmatprep.subr.mxu0 0.0
    %391 = vmatpush1.msra.mxu0 0.0
    %392 = vmatprep.subr.mxu0 0.0
    %393 = vmatpush1.msra.mxu0 0.0
    %394 = vmatprep.subr.mxu0 0.0
    %395 = vmatpush1.msra.mxu0 0.0
    %396 = vmatprep.subr.mxu0 0.0
    %397 = vmatpush1.msra.mxu0 0.0
    %398 = vmatprep.subr.mxu0 0.0
    %399 = vmatpush1.msra.mxu0 0.0
    %400 = vmatprep.subr.mxu0 0.0
    %401 = vmatpush1.msra.mxu0 0.0
    %402 = vmatprep.subr.mxu0 0.0
    %403 = vmatpush1.msra.mxu0 0.0
    %404 = vmatprep.subr.mxu0 0.0
    %405 = vmatpush1.msra.mxu0 0.0
    %406 = vmatprep.subr.mxu0 0.0
    %407 = vmatpush1.msra.mxu0 0.0
    %408 = vmatprep.subr.mxu0 0.0
    %409 = vmatpush1.msra.mxu0 0.0
    %410 = vmatprep.subr.mxu0 0.0
    %411 = vmatpush1.msra.mxu0 0.0
    %412 = vmatprep.subr.mxu0 0.0
    %413 = vmatpush1.msra.mxu0 0.0
    %414 = vmatprep.subr.mxu0 0.0
    %415 = vmatpush1.msra.mxu0 0.0
    %416 = vmatprep.subr.mxu0 0.0
    %417 = vmatpush1.msra.mxu0 0.0
    %418 = vmatprep.subr.mxu0 0.0
    %419 = vmatpush1.msra.mxu0 0.0
    %420 = vmatprep.subr.mxu0 0.0
    %421 = vmatpush1.msra.mxu0 0.0
    %422 = vmatprep.subr.mxu0 0.0
    %423 = vmatpush1.msra.mxu0 0.0
    %424 = vmatprep.subr.mxu0 0.0
    %425 = vmatpush1.msra.mxu0 0.0
    %426 = vmatprep.subr.mxu0 0.0
    %427 = vmatpush1.msra.mxu0 0.0
    %428 = vmatprep.subr.mxu0 0.0
    %429 = vmatpush1.msra.mxu0 0.0
    %430 = vmatprep.subr.mxu0 0.0
    %431 = vmatpush1.msra.mxu0 0.0
    %432 = vmatprep.subr.mxu0 0.0
    %433 = vmatpush1.msra.mxu0 0.0
    %434 = vmatprep.subr.mxu0 0.0
    %435 = vmatpush1.msra.mxu0 0.0
    %436 = vmatprep.subr.mxu0 0.0
    %437 = vmatpush1.msra.mxu0 0.0
    %438 = vmatprep.subr.mxu0 0.0
    %439 = vmatpush1.msra.mxu0 0.0
    %440 = vmatprep.subr.mxu0 0.0
    %441 = vmatpush1.msra.mxu0 0.0
    %442 = vmatprep.subr.mxu0 0.0
    %443 = vmatpush1.msra.mxu0 0.0
    %444 = vmatprep.mubr.f32.mxu0 0.0
    %445 = vmatmul.mubr.f32.gmra.mrb[0].mxu0 %v365
    %v446 = vpop.f32.mrb[0].mxu0
    %v447 = vadd.f32 %v361, %v446
    %v448 = vpop.f32.mrb[0].mxu0
    %v449 = vadd.f32 %v361, %v448
    %450 = vdwg.mxu0
    %451 = vmatprep.subr.mxu0 %v378
    %452 = vmatpush1.msra.mxu0 %v375
    %453 = vmatprep.subr.mxu0 0.0
    %454 = vmatpush1.msra.mxu0 0.0
    %455 = vmatprep.subr.mxu0 0.0
    %456 = vmatpush1.msra.mxu0 0.0
    %457 = vmatprep.subr.mxu0 0.0
    %458 = vmatpush1.msra.mxu0 0.0
    %459 = vmatprep.subr.mxu0 0.0
    %460 = vmatpush1.msra.mxu0 0.0
    %461 = vmatprep.subr.mxu0 0.0
    %462 = vmatpush1.msra.mxu0 0.0
    %463 = vmatprep.subr.mxu0 0.0
    %464 = vmatpush1.msra.mxu0 0.0
    %465 = vmatprep.subr.mxu0 0.0
    %466 = vmatpush1.msra.mxu0 0.0
    %467 = vmatprep.subr.mxu0 0.0
    %468 = vmatpush1.msra.mxu0 0.0
    %469 = vmatprep.subr.mxu0 0.0
    %470 = vmatpush1.msra.mxu0 0.0
    %471 = vmatprep.subr.mxu0 0.0
    %472 = vmatpush1.msra.mxu0 0.0
    %473 = vmatprep.subr.mxu0 0.0
    %474 = vmatpush1.msra.mxu0 0.0
    %475 = vmatprep.subr.mxu0 0.0
    %476 = vmatpush1.msra.mxu0 0.0
    %477 = vmatprep.subr.mxu0 0.0
    %478 = vmatpush1.msra.mxu0 0.0
    %479 = vmatprep.subr.mxu0 0.0
    %480 = vmatpush1.msra.mxu0 0.0
    %481 = vmatprep.subr.mxu0 0.0
    %482 = vmatpush1.msra.mxu0 0.0
    %483 = vmatprep.subr.mxu0 0.0
    %484 = vmatpush1.msra.mxu0 0.0
    %485 = vmatprep.subr.mxu0 0.0
    %486 = vmatpush1.msra.mxu0 0.0
    %487 = vmatprep.subr.mxu0 0.0
    %488 = vmatpush1.msra.mxu0 0.0
    %489 = vmatprep.subr.mxu0 0.0
    %490 = vmatpush1.msra.mxu0 0.0
    %491 = vmatprep.subr.mxu0 0.0
    %492 = vmatpush1.msra.mxu0 0.0
    %493 = vmatprep.subr.mxu0 0.0
    %494 = vmatpush1.msra.mxu0 0.0
    %495 = vmatprep.subr.mxu0 0.0
    %496 = vmatpush1.msra.mxu0 0.0
    %497 = vmatprep.subr.mxu0 0.0
    %498 = vmatpush1.msra.mxu0 0.0
    %499 = vmatprep.subr.mxu0 0.0
    %500 = vmatpush1.msra.mxu0 0.0
    %501 = vmatprep.subr.mxu0 0.0
    %502 = vmatpush1.msra.mxu0 0.0
    %503 = vmatprep.subr.mxu0 0.0
    %504 = vmatpush1.msra.mxu0 0.0
    %505 = vmatprep.subr.mxu0 0.0
    %506 = vmatpush1.msra.mxu0 0.0
    %507 = vmatprep.subr.mxu0 0.0
    %508 = vmatpush1.msra.mxu0 0.0
    %509 = vmatprep.subr.mxu0 0.0
    %510 = vmatpush1.msra.mxu0 0.0
    %511 = vmatprep.subr.mxu0 0.0
    %512 = vmatpush1.msra.mxu0 0.0
    %513 = vmatprep.subr.mxu0 0.0
    %514 = vmatpush1.msra.mxu0 0.0
    %515 = vmatprep.mubr.f32.mxu0 0.0
    %516 = vmatmul.mubr.f32.gmra.mrb[0].mxu0 %v365
    %v517 = vpop.f32.mrb[0].mxu0
    %v518 = vadd.f32 %v361, %v517
    %v519 = vpop.f32.mrb[0].mxu0
    %v520 = vadd.f32 %v361, %v519
    %521 = vdwg.mxu0
    %v522 = vmax.f32 %v447, 0.0
    %v523 = vmax.f32 %v449, 0.0
    %v524 = vmax.f32 %v518, 0.0
    %v525 = vmax.f32 %v520, 0.0
    %v530 = vrot.slane %v522, 4
    %v531 = vrot.slane %v523, 4
    %v532 = vrot.slane %v524, 4
    %v533 = vrot.slane %v525, 4
    %538 = vst [vmem:[#allocation2] sm:$0xf0] %v530
    %539 = vst [vmem:[#allocation2 + $0x8] sm:$0xf0] %v531
    %540 = vst [vmem:[#allocation2 + $0x10] sm:$0xf0] %v532
    %541 = vst [vmem:[#allocation2 + $0x18] sm:$0xf0] %v533
    %v542 = vld [vmem:[%s6] sm:$0xff]
    %v543 = vld [vmem:[#allocation2] sm:$0xff]
    %v544 = vld [vmem:[#allocation2 + $0x8] sm:$0xff]
    %v545 = vld [vmem:[#allocation2 + $0x10] sm:$0xff]
    %v546 = vld [vmem:[#allocation2 + $0x18] sm:$0xff]
    %v547 = vld [vmem:[%s7] sm:$0xff]
    %549 = vset.pattern.permute.xlu0 0
    %550 = vperm.xlu0 %549, %v547
    %v551 = vpop.permute.xlu0 %550
    %vm553 = vcmask 64512
    %v555 = vsel %vm553, %v542, 0
    %557 = vmatprep.subr.mxu0 %v544
    %558 = vmatpush1.msra.mxu0 %v543
    %559 = vmatprep.subr.mxu0 0.0
    %560 = vmatpush1.msra.mxu0 0.0
    %561 = vmatprep.subr.mxu0 0.0
    %562 = vmatpush1.msra.mxu0 0.0
    %563 = vmatprep.subr.mxu0 0.0
    %564 = vmatpush1.msra.mxu0 0.0
    %565 = vmatprep.subr.mxu0 0.0
    %566 = vmatpush1.msra.mxu0 0.0
    %567 = vmatprep.subr.mxu0 0.0
    %568 = vmatpush1.msra.mxu0 0.0
    %569 = vmatprep.subr.mxu0 0.0
    %570 = vmatpush1.msra.mxu0 0.0
    %571 = vmatprep.subr.mxu0 0.0
    %572 = vmatpush1.msra.mxu0 0.0
    %573 = vmatprep.subr.mxu0 0.0
    %574 = vmatpush1.msra.mxu0 0.0
    %575 = vmatprep.subr.mxu0 0.0
    %576 = vmatpush1.msra.mxu0 0.0
    %577 = vmatprep.subr.mxu0 0.0
    %578 = vmatpush1.msra.mxu0 0.0
    %579 = vmatprep.subr.mxu0 0.0
    %580 = vmatpush1.msra.mxu0 0.0
    %581 = vmatprep.subr.mxu0 0.0
    %582 = vmatpush1.msra.mxu0 0.0
    %583 = vmatprep.subr.mxu0 0.0
    %584 = vmatpush1.msra.mxu0 0.0
    %585 = vmatprep.subr.mxu0 0.0
    %586 = vmatpush1.msra.mxu0 0.0
    %587 = vmatprep.subr.mxu0 0.0
    %588 = vmatpush1.msra.mxu0 0.0
    %589 = vmatprep.subr.mxu0 0.0
    %590 = vmatpush1.msra.mxu0 0.0
    %591 = vmatprep.subr.mxu0 0.0
    %592 = vmatpush1.msra.mxu0 0.0
    %593 = vmatprep.subr.mxu0 0.0
    %594 = vmatpush1.msra.mxu0 0.0
    %595 = vmatprep.subr.mxu0 0.0
    %596 = vmatpush1.msra.mxu0 0.0
    %597 = vmatprep.subr.mxu0 0.0
    %598 = vmatpush1.msra.mxu0 0.0
    %599 = vmatprep.subr.mxu0 0.0
    %600 = vmatpush1.msra.mxu0 0.0
    %601 = vmatprep.subr.mxu0 0.0
    %602 = vmatpush1.msra.mxu0 0.0
    %603 = vmatprep.subr.mxu0 0.0
    %604 = vmatpush1.msra.mxu0 0.0
    %605 = vmatprep.subr.mxu0 0.0
    %606 = vmatpush1.msra.mxu0 0.0
    %607 = vmatprep.subr.mxu0 0.0
    %608 = vmatpush1.msra.mxu0 0.0
    %609 = vmatprep.subr.mxu0 0.0
    %610 = vmatpush1.msra.mxu0 0.0
    %611 = vmatprep.subr.mxu0 0.0
    %612 = vmatpush1.msra.mxu0 0.0
    %613 = vmatprep.subr.mxu0 0.0
    %614 = vmatpush1.msra.mxu0 0.0
    %615 = vmatprep.subr.mxu0 0.0
    %616 = vmatpush1.msra.mxu0 0.0
    %617 = vmatprep.subr.mxu0 0.0
    %618 = vmatpush1.msra.mxu0 0.0
    %619 = vmatprep.subr.mxu0 0.0
    %620 = vmatpush1.msra.mxu0 0.0
    %621 = vmatprep.mubr.f32.mxu0 0.0
    %622 = vmatmul.mubr.f32.gmra.mrb[0].mxu0 %v555
    %v623 = vpop.f32.mrb[0].mxu0
    %v624 = vadd.f32 %v551, %v623
    %v625 = vpop.f32.mrb[0].mxu0
    %v626 = vadd.f32 %v551, %v625
    %627 = vdwg.mxu0
    %628 = vmatprep.subr.mxu0 %v546
    %629 = vmatpush1.msra.mxu0 %v545
    %630 = vmatprep.subr.mxu0 0.0
    %631 = vmatpush1.msra.mxu0 0.0
    %632 = vmatprep.subr.mxu0 0.0
    %633 = vmatpush1.msra.mxu0 0.0
    %634 = vmatprep.subr.mxu0 0.0
    %635 = vmatpush1.msra.mxu0 0.0
    %636 = vmatprep.subr.mxu0 0.0
    %637 = vmatpush1.msra.mxu0 0.0
    %638 = vmatprep.subr.mxu0 0.0
    %639 = vmatpush1.msra.mxu0 0.0
    %640 = vmatprep.subr.mxu0 0.0
    %641 = vmatpush1.msra.mxu0 0.0
    %642 = vmatprep.subr.mxu0 0.0
    %643 = vmatpush1.msra.mxu0 0.0
    %644 = vmatprep.subr.mxu0 0.0
    %645 = vmatpush1.msra.mxu0 0.0
    %646 = vmatprep.subr.mxu0 0.0
    %647 = vmatpush1.msra.mxu0 0.0
    %648 = vmatprep.subr.mxu0 0.0
    %649 = vmatpush1.msra.mxu0 0.0
    %650 = vmatprep.subr.mxu0 0.0
    %651 = vmatpush1.msra.mxu0 0.0
    %652 = vmatprep.subr.mxu0 0.0
    %653 = vmatpush1.msra.mxu0 0.0
    %654 = vmatprep.subr.mxu0 0.0
    %655 = vmatpush1.msra.mxu0 0.0
    %656 = vmatprep.subr.mxu0 0.0
    %657 = vmatpush1.msra.mxu0 0.0
    %658 = vmatprep.subr.mxu0 0.0
    %659 = vmatpush1.msra.mxu0 0.0
    %660 = vmatprep.subr.mxu0 0.0
    %661 = vmatpush1.msra.mxu0 0.0
    %662 = vmatprep.subr.mxu0 0.0
    %663 = vmatpush1.msra.mxu0 0.0
    %664 = vmatprep.subr.mxu0 0.0
    %665 = vmatpush1.msra.mxu0 0.0
    %666 = vmatprep.subr.mxu0 0.0
    %667 = vmatpush1.msra.mxu0 0.0
    %668 = vmatprep.subr.mxu0 0.0
    %669 = vmatpush1.msra.mxu0 0.0
    %670 = vmatprep.subr.mxu0 0.0
    %671 = vmatpush1.msra.mxu0 0.0
    %672 = vmatprep.subr.mxu0 0.0
    %673 = vmatpush1.msra.mxu0 0.0
    %674 = vmatprep.subr.mxu0 0.0
    %675 = vmatpush1.msra.mxu0 0.0
    %676 = vmatprep.subr.mxu0 0.0
    %677 = vmatpush1.msra.mxu0 0.0
    %678 = vmatprep.subr.mxu0 0.0
    %679 = vmatpush1.msra.mxu0 0.0
    %680 = vmatprep.subr.mxu0 0.0
    %681 = vmatpush1.msra.mxu0 0.0
    %682 = vmatprep.subr.mxu0 0.0
    %683 = vmatpush1.msra.mxu0 0.0
    %684 = vmatprep.subr.mxu0 0.0
    %685 = vmatpush1.msra.mxu0 0.0
    %686 = vmatprep.subr.mxu0 0.0
    %687 = vmatpush1.msra.mxu0 0.0
    %688 = vmatprep.subr.mxu0 0.0
    %689 = vmatpush1.msra.mxu0 0.0
    %690 = vmatprep.subr.mxu0 0.0
    %691 = vmatpush1.msra.mxu0 0.0
    %692 = vmatprep.mubr.f32.mxu0 0.0
    %693 = vmatmul.mubr.f32.gmra.mrb[0].mxu0 %v555
    %v694 = vpop.f32.mrb[0].mxu0
    %v695 = vadd.f32 %v551, %v694
    %v696 = vpop.f32.mrb[0].mxu0
    %v697 = vadd.f32 %v551, %v696
    %698 = vdwg.mxu0
    %v699 = vmax.f32 %v624, 0.0
    %v700 = vmax.f32 %v626, 0.0
    %v701 = vmax.f32 %v695, 0.0
    %v702 = vmax.f32 %v697, 0.0
    %703 = vst [vmem:[#allocation3] sm:$0xff] %v699
    %704 = vst [vmem:[#allocation3 + $0x8] sm:$0xff] %v700
    %s705 = scalar_lea.vmem [#allocation3], 16
    %706 = vst [vmem:[%s705] sm:$0xff] %v701
    %707 = vst [vmem:[%s705 + $0x8] sm:$0xff] %v702
    // Predicated region
    $region34: #{tpu_custom_call.1} parent=1 // pred_check
      _
    $region35: #{tpu_custom_call.1} parent=1 // pred_check_branch
      %709 = sbr.rel (0) target = $region37
    $region36: #{tpu_custom_call.1} parent=1 // pred_region
      %s711 = ssub.s32 512, 512
      %712 = vsyncadd [#allocation4], %s711
      %s713 = sshll.u32 [#allocation3], 4
      %s714 = int_to_ptr.vmem [resolvable:$true] %s713
      %719 = dma.vmem_to_hbm [thread:$0]  %s714, 512, %s8, [#allocation4], 256, 256, 16
    $region37: #{tpu_custom_call.1} parent=1 // pred_fallthru
      _
    // Predicated region
    $region38: #{tpu_custom_call.1} parent=1 // pred_check
      _
    $region39: #{tpu_custom_call.1} parent=1 // pred_check_branch
      %721 = sbr.rel (0) target = $region41
    $region40: #{tpu_custom_call.1} parent=1 // pred_region
      %722 = dma.done [#allocation4], 512
    $region41: #{tpu_custom_call.1} parent=1 // pred_fallthru
      _
    %723 = vsyncpa [#allocation4], 1

</llo_original>
